<compile_context>
chip_gen: v7x
topology: tpu7x:2x2x1
jax: 0.10.0
libtpu: 0.0.40
codegen_flags: <defaults>
</compile_context>

<pallas_src>
import jax
import jax.numpy as jnp
from jax.experimental import pallas as pl
from jax.experimental.pallas import tpu as pltpu

_LANES = 512          # lane-dense last dim (multiple of 128)
_MAX_TILE_ROWS = 512  # per-buffer tile <= 512*512*4B = 1 MiB (f32)


def _round_up(v, m):
    return ((v + m - 1) // m) * m


def _loss_container_kernel(scalar_ref, x_ref, t_ref,
                           total_ref, mse_ref, l1_ref,
                           acc_sq, acc_abs):
    """One grid step over a (TR, LANES) tile of the flattened inputs.

    scalar_ref : (3,) f32 SMEM  -> [w0, w1, 1/B]
    x_ref/t_ref: (TR, LANES) VMEM tiles (storage dtype, cast to f32 here)
    total/mse/l1_ref : (1, 1) f32 SMEM scalar outputs
    acc_sq/acc_abs   : (TR, LANES) f32 VMEM accumulators (persist across grid)
    """
    step = pl.program_id(0)

    @pl.when(step == 0)
    def _():
        acc_sq[...] = jnp.zeros_like(acc_sq)
        acc_abs[...] = jnp.zeros_like(acc_abs)

    d = x_ref[...].astype(jnp.float32) - t_ref[...].astype(jnp.float32)
    acc_sq[...] += d * d           # pure VPU, no per-step cross-lane reduce
    acc_abs[...] += jnp.abs(d)

    @pl.when(step == pl.num_programs(0) - 1)
    def _():
        w0 = scalar_ref[0]
        w1 = scalar_ref[1]
        inv_b = scalar_ref[2]
        # Loss.reduce with reduction=None : loss.mean(0).sum() == sum(loss)/B
        mse = jnp.sum(acc_sq[...]) * inv_b
        l1 = jnp.sum(acc_abs[...]) * inv_b
        mse_ref[0, 0] = mse
        l1_ref[0, 0] = l1
        # LossContainer.forward: loss = w0 * criterion_0 + w1 * criterion_1
        total_ref[0, 0] = w0 * mse + w1 * l1


def loss_container_forward(x, target, weights=(1.0, 1.0), drop_detail=False):
    """JAX/Pallas equivalent of LossContainer([MSELoss(), L1Loss()], weight=weights)."""
    assert x.shape == target.shape
    b = x.shape[0]
    total_elems = int(x.size)

    # Sublane/lane-dense layout: (rows, 512) with rows a multiple of 8,
    # zero-padded.  Padded elements are zero in BOTH x and target, so they
    # contribute nothing to either sum.
    rows_needed = -(-total_elems // _LANES)
    rows_needed = max(8, _round_up(rows_needed, 8))
    tile_rows = min(_MAX_TILE_ROWS, rows_needed)
    rows_padded = _round_up(rows_needed, tile_rows)
    padded_elems = rows_padded * _LANES

    def _prep(a):
        flat = a.reshape(-1)               # keep storage dtype (bf16 stays bf16)
        if padded_elems != total_elems:
            flat = jnp.pad(flat, (0, padded_elems - total_elems))
        return flat.reshape(rows_padded, _LANES)

    x2 = _prep(x)
    t2 = _prep(target)

    # Runtime scalars in SMEM: no recompile when weights / batch change.
    scalars = jnp.array(
        [float(weights[0]), float(weights[1]), 1.0 / float(b)], dtype=jnp.float32
    )

    nsteps = rows_padded // tile_rows
    itemsize = jnp.dtype(x2.dtype).itemsize
    cost = pl.CostEstimate(
        flops=5 * padded_elems,            # sub, sq, abs, 2x accumulate
        transcendentals=0,
        bytes_accessed=2 * padded_elems * itemsize + 3 * 4 + 3 * 4,
    )

    out_shapes = (
        jax.ShapeDtypeStruct((1, 1), jnp.float32),  # total weighted loss
        jax.ShapeDtypeStruct((1, 1), jnp.float32),  # mse criterion (detail)
        jax.ShapeDtypeStruct((1, 1), jnp.float32),  # l1 criterion (detail)
    )

    total, mse, l1 = pl.pallas_call(
        _loss_container_kernel,
        out_shape=out_shapes,
        grid_spec=pltpu.PrefetchScalarGridSpec(
            num_scalar_prefetch=0,
            grid=(nsteps,),
            in_specs=[
                pl.BlockSpec(memory_space=pltpu.SMEM),                 # [w0, w1, 1/B]
                pl.BlockSpec((tile_rows, _LANES), lambda i: (i, 0)),   # x tile
                pl.BlockSpec((tile_rows, _LANES), lambda i: (i, 0)),   # target tile
            ],
            out_specs=[
                pl.BlockSpec(memory_space=pltpu.SMEM),
                pl.BlockSpec(memory_space=pltpu.SMEM),
                pl.BlockSpec(memory_space=pltpu.SMEM),
            ],
            scratch_shapes=[
                pltpu.VMEM((tile_rows, _LANES), jnp.float32),  # sum of squares acc
                pltpu.VMEM((tile_rows, _LANES), jnp.float32),  # sum of |d| acc
            ],
        ),
        compiler_params=pltpu.CompilerParams(
            dimension_semantics=("arbitrary",),        # carried accumulators
            vmem_limit_bytes=32 * 1024 * 1024,
        ),
        cost_estimate=cost,
    )(scalars, x2, t2)

    total = total[0, 0]
    if drop_detail:
        # mirror of LossContainer._append_losses key merging (keys are distinct here)
        loss_dict = {"mse": mse[0, 0], "l1": l1[0, 0]}
        return total, loss_dict
    return total


def _reference(x, target, weights):
    x = x.astype(jnp.float32)
    t = target.astype(jnp.float32)
    d = x - t
    # reduction=None -> loss.mean(0).sum()
    mse = (d * d).mean(axis=0).sum()
    l1 = jnp.abs(d).mean(axis=0).sum()
    return weights[0] * mse + weights[1] * l1, mse, l1


if __name__ == "__main__":
    key = jax.random.PRNGKey(0)
    kx, kt = jax.random.split(key)
    B, C, H, W = 2, 4, 16, 16
    x = jax.random.normal(kx, (B, C, H, W), dtype=jnp.float32)
    target = jax.random.normal(kt, (B, C, H, W), dtype=jnp.float32)

    weights = (0.7, 0.3)  # deterministic container weights

    total, details = loss_container_forward(x, target, weights=weights, drop_detail=True)
    total = jax.block_until_ready(total)

    ref_total, ref_mse, ref_l1 = _reference(x, target, weights)
    assert jnp.allclose(total, ref_total, rtol=1e-5, atol=1e-5), (total, ref_total)
    assert jnp.allclose(details["mse"], ref_mse, rtol=1e-5, atol=1e-5)
    assert jnp.allclose(details["l1"], ref_l1, rtol=1e-5, atol=1e-5)

    print("KERNEL_OK")
</pallas_src>

<mosaic_0001>
module attributes {stable_mosaic.version = 11 : i64} {
  func.func @_loss_container_kernel(%arg0: i32, %arg1: memref<3xf32, #tpu.memory_space<smem>>, %arg2: memref<8x512xf32, #tpu.memory_space<vmem>>, %arg3: memref<8x512xf32, #tpu.memory_space<vmem>>, %arg4: memref<1x1xf32, #tpu.memory_space<smem>>, %arg5: memref<1x1xf32, #tpu.memory_space<smem>>, %arg6: memref<1x1xf32, #tpu.memory_space<smem>>, %arg7: memref<8x512xf32, #tpu.memory_space<vmem>>, %arg8: memref<8x512xf32, #tpu.memory_space<vmem>>) attributes {dimension_semantics = [#tpu.dimension_semantics<arbitrary>], iteration_bounds = array<i64: 1>, scalar_prefetch = 0 : i64, scratch_operands = 2 : i64, tpu.core_type = #tpu.core_type<tc>, window_params = [{transform_indices = @transform_0, window_bounds = array<i64: 3>}, {transform_indices = @transform_1, window_bounds = array<i64: 8, 512>}, {transform_indices = @transform_2, window_bounds = array<i64: 8, 512>}, {transform_indices = @transform_3, window_bounds = array<i64: 1, 1>}, {transform_indices = @transform_4, window_bounds = array<i64: 1, 1>}, {transform_indices = @transform_5, window_bounds = array<i64: 1, 1>}]} {
    %c0_i32 = arith.constant 0 : i32
    %0 = arith.cmpi eq, %arg0, %c0_i32 : i32
    %1 = arith.extui %0 : i1 to i32
    %c0_i32_0 = arith.constant 0 : i32
    %2 = arith.cmpi ne, %1, %c0_i32_0 : i32
    scf.if %2 {
      %cst = arith.constant 0.000000e+00 : f32
      %17 = vector.broadcast %cst : f32 to vector<8x512xf32>
      %c0_14 = arith.constant 0 : index
      %c0_15 = arith.constant 0 : index
      %18 = vector.load %arg7[%c0_14, %c0_15] : memref<8x512xf32, #tpu.memory_space<vmem>>, vector<8x512xf32>
      tpu.vector_store %arg7[%c0_14, %c0_15], %17 {strides = array<i32>} : memref<8x512xf32, #tpu.memory_space<vmem>>, vector<8x512xf32>,
      %cst_16 = arith.constant 0.000000e+00 : f32
      %19 = vector.broadcast %cst_16 : f32 to vector<8x512xf32>
      %c0_17 = arith.constant 0 : index
      %c0_18 = arith.constant 0 : index
      %20 = vector.load %arg8[%c0_17, %c0_18] : memref<8x512xf32, #tpu.memory_space<vmem>>, vector<8x512xf32>
      tpu.vector_store %arg8[%c0_17, %c0_18], %19 {strides = array<i32>} : memref<8x512xf32, #tpu.memory_space<vmem>>, vector<8x512xf32>,
    } else {
    }
    %c0 = arith.constant 0 : index
    %c0_1 = arith.constant 0 : index
    %3 = vector.load %arg2[%c0, %c0_1] : memref<8x512xf32, #tpu.memory_space<vmem>>, vector<8x512xf32>
    %c0_2 = arith.constant 0 : index
    %c0_3 = arith.constant 0 : index
    %4 = vector.load %arg3[%c0_2, %c0_3] : memref<8x512xf32, #tpu.memory_space<vmem>>, vector<8x512xf32>
    %5 = arith.subf %3, %4 : vector<8x512xf32>
    %c0_4 = arith.constant 0 : index
    %c0_5 = arith.constant 0 : index
    %6 = vector.load %arg7[%c0_4, %c0_5] : memref<8x512xf32, #tpu.memory_space<vmem>>, vector<8x512xf32>
    %7 = arith.mulf %5, %5 : vector<8x512xf32>
    %8 = arith.addf %6, %7 : vector<8x512xf32>
    %c0_6 = arith.constant 0 : index
    %c0_7 = arith.constant 0 : index
    %9 = vector.load %arg7[%c0_6, %c0_7] : memref<8x512xf32, #tpu.memory_space<vmem>>, vector<8x512xf32>
    tpu.vector_store %arg7[%c0_6, %c0_7], %8 {strides = array<i32>} : memref<8x512xf32, #tpu.memory_space<vmem>>, vector<8x512xf32>,
    %c0_8 = arith.constant 0 : index
    %c0_9 = arith.constant 0 : index
    %10 = vector.load %arg8[%c0_8, %c0_9] : memref<8x512xf32, #tpu.memory_space<vmem>>, vector<8x512xf32>
    %11 = math.absf %5 : vector<8x512xf32>
    %12 = arith.addf %10, %11 : vector<8x512xf32>
    %c0_10 = arith.constant 0 : index
    %c0_11 = arith.constant 0 : index
    %13 = vector.load %arg8[%c0_10, %c0_11] : memref<8x512xf32, #tpu.memory_space<vmem>>, vector<8x512xf32>
    tpu.vector_store %arg8[%c0_10, %c0_11], %12 {strides = array<i32>} : memref<8x512xf32, #tpu.memory_space<vmem>>, vector<8x512xf32>,
    %c0_i32_12 = arith.constant 0 : i32
    %14 = arith.cmpi eq, %arg0, %c0_i32_12 : i32
    %15 = arith.extui %14 : i1 to i32
    %c0_i32_13 = arith.constant 0 : i32
    %16 = arith.cmpi ne, %15, %c0_i32_13 : i32
    scf.if %16 {
      %c0_14 = arith.constant 0 : index
      %17 = memref.load %arg1[%c0_14] : memref<3xf32, #tpu.memory_space<smem>>
      %c1 = arith.constant 1 : index
      %18 = memref.load %arg1[%c1] : memref<3xf32, #tpu.memory_space<smem>>
      %c2 = arith.constant 2 : index
      %19 = memref.load %arg1[%c2] : memref<3xf32, #tpu.memory_space<smem>>
      %c0_15 = arith.constant 0 : index
      %c0_16 = arith.constant 0 : index
      %20 = vector.load %arg7[%c0_15, %c0_16] : memref<8x512xf32, #tpu.memory_space<vmem>>, vector<8x512xf32>
      %21 = vector.shape_cast %20 : vector<8x512xf32> to vector<1x8x512xf32>
      %cst = arith.constant dense<0.000000e+00> : vector<1xf32>
      %22 = vector.multi_reduction <add>, %21, %cst [1, 2] : vector<1x8x512xf32> to vector<1xf32>
      %23 = vector.shape_cast %22 : vector<1xf32> to vector<1x1x1xf32>
      %24 = vector.extract %23[0, 0, 0] : f32 from vector<1x1x1xf32>
      %25 = arith.mulf %24, %19 : f32
      %c0_17 = arith.constant 0 : index
      %c0_18 = arith.constant 0 : index
      %26 = vector.load %arg8[%c0_17, %c0_18] : memref<8x512xf32, #tpu.memory_space<vmem>>, vector<8x512xf32>
      %27 = vector.shape_cast %26 : vector<8x512xf32> to vector<1x8x512xf32>
      %cst_19 = arith.constant dense<0.000000e+00> : vector<1xf32>
      %28 = vector.multi_reduction <add>, %27, %cst_19 [1, 2] : vector<1x8x512xf32> to vector<1xf32>
      %29 = vector.shape_cast %28 : vector<1xf32> to vector<1x1x1xf32>
      %30 = vector.extract %29[0, 0, 0] : f32 from vector<1x1x1xf32>
      %31 = arith.mulf %30, %19 : f32
      %c0_20 = arith.constant 0 : index
      %c0_21 = arith.constant 0 : index
      %32 = memref.load %arg5[%c0_20, %c0_21] : memref<1x1xf32, #tpu.memory_space<smem>>
      memref.store %25, %arg5[%c0_20, %c0_21] : memref<1x1xf32, #tpu.memory_space<smem>>
      %c0_22 = arith.constant 0 : index
      %c0_23 = arith.constant 0 : index
      %33 = memref.load %arg6[%c0_22, %c0_23] : memref<1x1xf32, #tpu.memory_space<smem>>
      memref.store %31, %arg6[%c0_22, %c0_23] : memref<1x1xf32, #tpu.memory_space<smem>>
      %34 = arith.mulf %17, %25 : f32
      %35 = arith.mulf %18, %31 : f32
      %36 = arith.addf %34, %35 : f32
      %c0_24 = arith.constant 0 : index
      %c0_25 = arith.constant 0 : index
      %37 = memref.load %arg4[%c0_24, %c0_25] : memref<1x1xf32, #tpu.memory_space<smem>>
      memref.store %36, %arg4[%c0_24, %c0_25] : memref<1x1xf32, #tpu.memory_space<smem>>
    } else {
    }
    return
  }
  func.func @transform_0(%arg0: i32) -> i32 {
    %c0_i32 = arith.constant 0 : i32
    %c0_i32_0 = arith.constant 0 : i32
    return %c0_i32 : i32
  }
  func.func @transform_1(%arg0: i32) -> (i32, i32) {
    %c0_i32 = arith.constant 0 : i32
    %c0_i32_0 = arith.constant 0 : i32
    return %arg0, %c0_i32 : i32, i32
  }
  func.func @transform_2(%arg0: i32) -> (i32, i32) {
    %c0_i32 = arith.constant 0 : i32
    %c0_i32_0 = arith.constant 0 : i32
    return %arg0, %c0_i32 : i32, i32
  }
  func.func @transform_3(%arg0: i32) -> (i32, i32) {
    %c0_i32 = arith.constant 0 : i32
    %c0_i32_0 = arith.constant 0 : i32
    %c0_i32_1 = arith.constant 0 : i32
    return %c0_i32, %c0_i32_0 : i32, i32
  }
  func.func @transform_4(%arg0: i32) -> (i32, i32) {
    %c0_i32 = arith.constant 0 : i32
    %c0_i32_0 = arith.constant 0 : i32
    %c0_i32_1 = arith.constant 0 : i32
    return %c0_i32, %c0_i32_0 : i32, i32
  }
  func.func @transform_5(%arg0: i32) -> (i32, i32) {
    %c0_i32 = arith.constant 0 : i32
    %c0_i32_0 = arith.constant 0 : i32
    %c0_i32_1 = arith.constant 0 : i32
    return %c0_i32, %c0_i32_0 : i32, i32
  }
}

</mosaic_0001>

<llo_original>
// kernel: tpu_custom_call.1
$region0: #{tpu_custom_call.1}
  #allocation0 [shape = 'u32[]', space=smem, size = 0x4, offset = 0x4, fixed_abs, tag = 'smem constant byte address 0x4 - core index']
  #allocation1 [shape = 'u32[144,128]{1,0:T(1,128)}', space=vmem, size = 0x12000, scoped, tag = 'internal scratch']
  #allocation2 [shape = 'f32[8,512]{1,0:T(8,128)}', space=vmem, size = 0x4000, scoped, tag = 'scratch operand']
  #allocation3 [shape = 'f32[8,512]{1,0:T(8,128)}', space=vmem, size = 0x4000, scoped, tag = 'scratch operand']
  %s0 = inlined_call_operand.hbm [shape: f32[3], index: 0, kind: input, shape index: {}]
  %s1 = inlined_call_operand.hbm [shape: f32[8,512], index: 1, kind: input, shape index: {}]
  %s2 = inlined_call_operand.hbm [shape: f32[8,512], index: 2, kind: input, shape index: {}]
  %s3 = inlined_call_operand.hbm [shape: f32[1,1], index: 3, kind: output, shape index: {0}]
  %s4 = inlined_call_operand.hbm [shape: f32[1,1], index: 4, kind: output, shape index: {1}]
  %s5 = inlined_call_operand.hbm [shape: f32[1,1], index: 5, kind: output, shape index: {2}]
  %6 = xla_tuple %s3, %s4, %s5
  %s7 = sld [smem:[#allocation0]]
  $region58: #{tpu_custom_call.1} parent=0
    _
  %s9 = ssub.s32 1, %s7
  %s10 = scalar_select 0, %s9, %s7
  $region1: #{tpu_custom_call.1} parent=0
    #allocation4 [shape = 'u8[512]{0}', space=smem, size = 0x200, scoped, tag = 'input window, operand 0, single buffered']
    #allocation5 [shape = 's32[1]{0}', space=sflag, size = 0x4, scoped, tag = 'scoped memory for tpu_custom_call.1']
    #allocation6 [shape = 's32[1]{0}', space=sflag, size = 0x4, scoped, tag = 'scoped memory for tpu_custom_call.1']
    #allocation7 [shape = 's32[1]{0}', space=sflag, size = 0x4, scoped, tag = 'scoped memory for tpu_custom_call.1']
    #allocation8 [shape = 'u8[16384]{0}', space=vmem, size = 0x4000, scoped, tag = 'input window, operand 1, single buffered']
    #allocation9 [shape = 'u8[16384]{0}', space=vmem, size = 0x4000, scoped, tag = 'input window, operand 2, single buffered']
    #allocation10 [shape = 's32[1]{0}', space=sflag, size = 0x4, scoped, tag = 'scoped memory for tpu_custom_call.1']
    #allocation11 [shape = 'u8[512]{0}', space=smem, size = 0x200, scoped, tag = 'output window, operand 0, single buffered']
    #allocation12 [shape = 'u8[512]{0}', space=smem, size = 0x200, scoped, tag = 'output window, operand 1, single buffered']
    #allocation13 [shape = 's32[1]{0}', space=sflag, size = 0x4, scoped, tag = 'scoped memory for tpu_custom_call.1']
    #allocation14 [shape = 'u8[512]{0}', space=smem, size = 0x200, scoped, tag = 'output window, operand 2, single buffered']
    %11 = vsyncpa [#allocation6], 0
    %12 = vsyncpa [#allocation5], 0
    %13 = vsyncpa [#allocation10], 0
    %14 = vsyncpa [#allocation7], 0
    %15 = vsyncpa [#allocation13], 0
    // Predicated region
    $region2: #{tpu_custom_call.1} parent=1 // pred_check
      _
    $region3: #{tpu_custom_call.1} parent=1 // pred_check_branch
      %17 = sbr.rel (0) target = $region5
    $region4: #{tpu_custom_call.1} parent=1 // pred_region
      %s19 = ssub.s32 16, 16
      %20 = vsyncadd [#allocation6], %s19
      %23 = dma.hbm_to_smem %s0, 16, [#allocation4], [#allocation6]
    $region5: #{tpu_custom_call.1} parent=1 // pred_fallthru
      _
    // Predicated region
    $region6: #{tpu_custom_call.1} parent=1 // pred_check
      _
    $region7: #{tpu_custom_call.1} parent=1 // pred_check_branch
      %25 = sbr.rel (0) target = $region9
    $region8: #{tpu_custom_call.1} parent=1 // pred_region
      %s27 = ssub.s32 512, 512
      %28 = vsyncadd [#allocation5], %s27
      %s30 = sshll.u32 [#allocation8], 4
      %s31 = int_to_ptr.vmem [resolvable:$true] %s30
      %33 = dma.hbm_to_vmem [thread:$0]  %s1, 512, %s31, [#allocation5]
    $region9: #{tpu_custom_call.1} parent=1 // pred_fallthru
      _
    // Predicated region
    $region10: #{tpu_custom_call.1} parent=1 // pred_check
      _
    $region11: #{tpu_custom_call.1} parent=1 // pred_check_branch
      %35 = sbr.rel (0) target = $region13
    $region12: #{tpu_custom_call.1} parent=1 // pred_region
      %s37 = ssub.s32 512, 512
      %38 = vsyncadd [#allocation10], %s37
      %s40 = sshll.u32 [#allocation9], 4
      %s41 = int_to_ptr.vmem [resolvable:$true] %s40
      %43 = dma.hbm_to_vmem [thread:$0]  %s2, 512, %s41, [#allocation10]
    $region13: #{tpu_custom_call.1} parent=1 // pred_fallthru
      _
    // Predicated region
    $region14: #{tpu_custom_call.1} parent=1 // pred_check
      _
    $region15: #{tpu_custom_call.1} parent=1 // pred_check_branch
      %45 = sbr.rel (0) target = $region17
    $region16: #{tpu_custom_call.1} parent=1 // pred_region
      %46 = dma.done [#allocation6], 16
    $region17: #{tpu_custom_call.1} parent=1 // pred_fallthru
      _
    // Predicated region
    $region18: #{tpu_custom_call.1} parent=1 // pred_check
      _
    $region19: #{tpu_custom_call.1} parent=1 // pred_check_branch
      %48 = sbr.rel (0) target = $region21
    $region20: #{tpu_custom_call.1} parent=1 // pred_region
      %49 = dma.done [#allocation5], 512
    $region21: #{tpu_custom_call.1} parent=1 // pred_fallthru
      _
    // Predicated region
    $region22: #{tpu_custom_call.1} parent=1 // pred_check
      _
    $region23: #{tpu_custom_call.1} parent=1 // pred_check_branch
      %51 = sbr.rel (0) target = $region25
    $region24: #{tpu_custom_call.1} parent=1 // pred_region
      %52 = dma.done [#allocation10], 512
    $region25: #{tpu_custom_call.1} parent=1 // pred_fallthru
      _
    %53 = sfence
    %p54 = scmp.eq.s32.totalorder 0, 0
    // Predicated region
    $region26: #{tpu_custom_call.1} parent=1 // pred_check
      %p55 = pneg %p54
    $region27: #{tpu_custom_call.1} parent=1 // pred_check_branch
      %57 = sbr.rel (%p55) target = $region29
    $region28: #{tpu_custom_call.1} parent=1 // pred_region
      %58 = vst [vmem:[#allocation2] sm:$0xff] 0.0
      %59 = vst [vmem:[#allocation2 + $0x8] sm:$0xff] 0.0
      %60 = vst [vmem:[#allocation2 + $0x10] sm:$0xff] 0.0
      %61 = vst [vmem:[#allocation2 + $0x18] sm:$0xff] 0.0
      %62 = vst [vmem:[#allocation3] sm:$0xff] 0.0
      %63 = vst [vmem:[#allocation3 + $0x8] sm:$0xff] 0.0
      %64 = vst [vmem:[#allocation3 + $0x10] sm:$0xff] 0.0
      %65 = vst [vmem:[#allocation3 + $0x18] sm:$0xff] 0.0
    $region29: #{tpu_custom_call.1} parent=1 // pred_fallthru
      _
    %v66 = vld [vmem:[#allocation8] sm:$0xff]
    %v67 = vld [vmem:[#allocation8 + $0x8] sm:$0xff]
    %v68 = vld [vmem:[#allocation8 + $0x10] sm:$0xff]
    %v69 = vld [vmem:[#allocation8 + $0x18] sm:$0xff]
    %v70 = vld [vmem:[#allocation9] sm:$0xff]
    %v71 = vld [vmem:[#allocation9 + $0x8] sm:$0xff]
    %v72 = vld [vmem:[#allocation9 + $0x10] sm:$0xff]
    %v73 = vld [vmem:[#allocation9 + $0x18] sm:$0xff]
    %v74 = vsub.f32 %v66, %v70
    %v75 = vsub.f32 %v67, %v71
    %v76 = vsub.f32 %v68, %v72
    %v77 = vsub.f32 %v69, %v73
    %v78 = vld [vmem:[#allocation2] sm:$0xff]
    %v79 = vld [vmem:[#allocation2 + $0x8] sm:$0xff]
    %v80 = vld [vmem:[#allocation2 + $0x10] sm:$0xff]
    %v81 = vld [vmem:[#allocation2 + $0x18] sm:$0xff]
    %v82 = vmul.f32 %v74, %v74
    %v83 = vmul.f32 %v75, %v75
    %v84 = vmul.f32 %v76, %v76
    %v85 = vmul.f32 %v77, %v77
    %v86 = vadd.f32 %v78, %v82
    %v87 = vadd.f32 %v79, %v83
    %v88 = vadd.f32 %v80, %v84
    %v89 = vadd.f32 %v81, %v85
    %90 = vst [vmem:[#allocation2] sm:$0xff] %v86
    %91 = vst [vmem:[#allocation2 + $0x8] sm:$0xff] %v87
    %92 = vst [vmem:[#allocation2 + $0x10] sm:$0xff] %v88
    %93 = vst [vmem:[#allocation2 + $0x18] sm:$0xff] %v89
    %v94 = vld [vmem:[#allocation3] sm:$0xff]
    %v95 = vld [vmem:[#allocation3 + $0x8] sm:$0xff]
    %v96 = vld [vmem:[#allocation3 + $0x10] sm:$0xff]
    %v97 = vld [vmem:[#allocation3 + $0x18] sm:$0xff]
    %v98 = vand.u32 2147483647, %v74
    %v99 = vand.u32 2147483647, %v75
    %v100 = vand.u32 2147483647, %v76
    %v101 = vand.u32 2147483647, %v77
    %v102 = vadd.f32 %v94, %v98
    %v103 = vadd.f32 %v95, %v99
    %v104 = vadd.f32 %v96, %v100
    %v105 = vadd.f32 %v97, %v101
    %106 = vst [vmem:[#allocation3] sm:$0xff] %v102
    %107 = vst [vmem:[#allocation3 + $0x8] sm:$0xff] %v103
    %108 = vst [vmem:[#allocation3 + $0x10] sm:$0xff] %v104
    %109 = vst [vmem:[#allocation3 + $0x18] sm:$0xff] %v105
    // Predicated region
    $region30: #{tpu_custom_call.1} parent=1 // pred_check
      %p110 = pneg %p54
    $region31: #{tpu_custom_call.1} parent=1 // pred_check_branch
      %112 = sbr.rel (%p110) target = $region33
    $region32: #{tpu_custom_call.1} parent=1 // pred_region
      %s113 = sld [smem:[#allocation4]]
      %s114 = sld [smem:[#allocation4 + $0x1]]
      %s115 = sld [smem:[#allocation4 + $0x2]]
      %v116 = vld [vmem:[#allocation2] sm:$0xff]
      %v117 = vld [vmem:[#allocation2 + $0x8] sm:$0xff]
      %v118 = vld [vmem:[#allocation2 + $0x10] sm:$0xff]
      %v119 = vld [vmem:[#allocation2 + $0x18] sm:$0xff]
      %v120 = vadd.f32 %v116, %v117
      %v121 = vadd.f32 %v120, %v118
      %v122 = vadd.f32 %v121, %v119
      %123 = vadd.xlane.f32.xlu0 %v122
      %v124 = vpop.xlane.xlu0 %123
      %v125 = vrot.slane %v124, 4
      %v126 = vadd.f32 %v124, %v125
      %v127 = vrot.slane %v126, 2
      %v128 = vadd.f32 %v126, %v127
      %v129 = vrot.slane %v128, 1
      %v130 = vadd.f32 %v128, %v129
      %s131 = vtos %v130
      %s132 = smul.f32 %s131, %s115
      %v133 = vld [vmem:[#allocation3] sm:$0xff]
      %v134 = vld [vmem:[#allocation3 + $0x8] sm:$0xff]
      %v135 = vld [vmem:[#allocation3 + $0x10] sm:$0xff]
      %v136 = vld [vmem:[#allocation3 + $0x18] sm:$0xff]
      %v137 = vadd.f32 %v133, %v134
      %v138 = vadd.f32 %v137, %v135
      %v139 = vadd.f32 %v138, %v136
      %140 = vadd.xlane.f32.xlu0 %v139
      %v141 = vpop.xlane.xlu0 %140
      %v142 = vrot.slane %v141, 4
      %v143 = vadd.f32 %v141, %v142
      %v144 = vrot.slane %v143, 2
      %v145 = vadd.f32 %v143, %v144
      %v146 = vrot.slane %v145, 1
      %v147 = vadd.f32 %v145, %v146
      %s148 = vtos %v147
      %s149 = smul.f32 %s148, %s115
      %s150 = scalar_lea.smem [#allocation12], 0
      %151 = sst [smem:[%s150]] %s132
      %s152 = scalar_lea.smem [#allocation14], 0
      %153 = sst [smem:[%s152]] %s149
      %s154 = smul.f32 %s113, %s132
      %s155 = smul.f32 %s114, %s149
      %s156 = sadd.f32 %s154, %s155
      %s157 = scalar_lea.smem [#allocation11], 0
      %158 = sst [smem:[%s157]] %s156
    $region33: #{tpu_custom_call.1} parent=1 // pred_fallthru
      _
    // Predicated region
    $region34: #{tpu_custom_call.1} parent=1 // pred_check
      _
    $region35: #{tpu_custom_call.1} parent=1 // pred_check_branch
      %160 = sbr.rel (0) target = $region37
    $region36: #{tpu_custom_call.1} parent=1 // pred_region
      %s162 = ssub.s32 16, 16
      %163 = vsyncadd [#allocation7], %s162
      %166 = dma.smem_to_hbm [#allocation11], 16, %s3, [#allocation7]
    $region37: #{tpu_custom_call.1} parent=1 // pred_fallthru
      _
    // Predicated region
    $region38: #{tpu_custom_call.1} parent=1 // pred_check
      _
    $region39: #{tpu_custom_call.1} parent=1 // pred_check_branch
      %168 = sbr.rel (0) target = $region41
    $region40: #{tpu_custom_call.1} parent=1 // pred_region
      %s170 = ssub.s32 16, 16
      %171 = vsyncadd [#allocation13], %s170
      %174 = dma.smem_to_hbm [#allocation12], 16, %s4, [#allocation13]
    $region41: #{tpu_custom_call.1} parent=1 // pred_fallthru
      _
    // Predicated region
    $region42: #{tpu_custom_call.1} parent=1 // pred_check
      _
    $region43: #{tpu_custom_call.1} parent=1 // pred_check_branch
      %176 = sbr.rel (0) target = $region45
    $region44: #{tpu_custom_call.1} parent=1 // pred_region
      %s178 = ssub.s32 16, 16
      %179 = vsyncadd [#allocation13], %s178
      %182 = dma.smem_to_hbm [#allocation14], 16, %s5, [#allocation13]
    $region45: #{tpu_custom_call.1} parent=1 // pred_fallthru
      _
    // Predicated region
    $region46: #{tpu_custom_call.1} parent=1 // pred_check
      _
    $region47: #{tpu_custom_call.1} parent=1 // pred_check_branch
      %184 = sbr.rel (0) target = $region49
    $region48: #{tpu_custom_call.1} parent=1 // pred_region
      %185 = dma.done [#allocation7], 16
    $region49: #{tpu_custom_call.1} parent=1 // pred_fallthru
      _
    // Predicated region
    $region50: #{tpu_custom_call.1} parent=1 // pred_check
      _
    $region51: #{tpu_custom_call.1} parent=1 // pred_check_branch
      %187 = sbr.rel (0) target = $region53
    $region52: #{tpu_custom_call.1} parent=1 // pred_region
      %188 = dma.done [#allocation13], 16
    $region53: #{tpu_custom_call.1} parent=1 // pred_fallthru
      _
    // Predicated region
    $region54: #{tpu_custom_call.1} parent=1 // pred_check
      _
    $region55: #{tpu_custom_call.1} parent=1 // pred_check_branch
      %190 = sbr.rel (0) target = $region57
    $region56: #{tpu_custom_call.1} parent=1 // pred_region
      %191 = dma.done [#allocation13], 16
    $region57: #{tpu_custom_call.1} parent=1 // pred_fallthru
      _
    %192 = sfence
    %193 = vsyncpa [#allocation5], 1
    %194 = vsyncpa [#allocation10], 1
    %195 = vsyncpa [#allocation6], 1
    %196 = vsyncpa [#allocation7], 1
    %197 = vsyncpa [#allocation13], 1

</llo_original>
